<compile_context>
chip_gen: v6e
topology: v6e:2x2x1
jax: 0.10.0
libtpu: 0.0.40
codegen_flags: <defaults>
</compile_context>

<pallas_src>
import functools

import jax
import jax.numpy as jnp
from jax.experimental import pallas as pl
from jax.experimental.pallas import tpu as pltpu


def _ru(x, m):
    return (x + m - 1) // m * m


def _ca_kernel(x_ref, w1_ref, w2_ref, o_ref, sum_sc, max_sc, *, hw, thw):
    """x_ref: [1, thw, Cp], w1_ref: [Cp, Cm], w2_ref: [Cm, Cp], o_ref: [1, 1, Cp]."""
    j = pl.program_id(1)

    @pl.when(j == 0)
    def _():
        sum_sc[...] = jnp.zeros_like(sum_sc)
        max_sc[...] = jnp.full(max_sc.shape, -jnp.inf, jnp.float32)

    xb = x_ref[0]                                                # [thw, Cp]
    row = j * thw + jax.lax.broadcasted_iota(jnp.int32, (thw, 1), 0)
    valid = row < hw                                             # mask spatial padding
    sum_sc[...] += jnp.sum(jnp.where(valid, xb, 0.0), axis=0, keepdims=True)
    max_sc[...] = jnp.maximum(
        max_sc[...],
        jnp.max(jnp.where(valid, xb, -jnp.inf), axis=0, keepdims=True))

    @pl.when(j == pl.num_programs(1) - 1)
    def _():
        avg = sum_sc[...] * (1.0 / hw)                           # [1, Cp]
        mx = max_sc[...]                                         # [1, Cp]
        w1 = w1_ref[...]
        w2 = w2_ref[...]
        h_a = jnp.maximum(jnp.dot(avg, w1, preferred_element_type=jnp.float32), 0.0)
        h_m = jnp.maximum(jnp.dot(mx, w1, preferred_element_type=jnp.float32), 0.0)
        y = (jnp.dot(h_a, w2, preferred_element_type=jnp.float32)
             + jnp.dot(h_m, w2, preferred_element_type=jnp.float32))
        o_ref[0] = 1.0 / (1.0 + jnp.exp(-y))                     # sigmoid


def channel_attention(x_nchw, w1, w2):
    """x_nchw: [N, C, H, W];  w1: [Cmid, C] (fc[0].weight squeezed);  w2: [C, Cmid].

    Returns sigmoid(fc(avg_pool(x)) + fc(max_pool(x))) of shape [N, C, 1, 1].
    """
    N, C, H, W = x_nchw.shape
    Cmid = w1.shape[0]
    HW = H * W

    Cp = _ru(C, 128)                     # channels on the lane axis, lane-dense
    Cm = _ru(Cmid, 128)
    thw = min(512, _ru(HW, 8))           # spatial reduction tile (sublane axis)
    HWp = _ru(HW, thw)

    # NCHW -> [N, HW, C] with C on lanes; pad once (zero pads are masked in-kernel).
    x = jnp.transpose(x_nchw, (0, 2, 3, 1)).reshape(N, HW, C).astype(jnp.float32)
    x = jnp.pad(x, ((0, 0), (0, HWp - HW), (0, Cp - C)))
    w1m = jnp.pad(jnp.transpose(w1).astype(jnp.float32),
                  ((0, Cp - C), (0, Cm - Cmid)))                  # [Cp, Cm]
    w2m = jnp.pad(jnp.transpose(w2).astype(jnp.float32),
                  ((0, Cm - Cmid), (0, Cp - C)))                  # [Cm, Cp]

    out = pl.pallas_call(
        functools.partial(_ca_kernel, hw=HW, thw=thw),
        out_shape=jax.ShapeDtypeStruct((N, 1, Cp), jnp.float32),
        grid_spec=pltpu.PrefetchScalarGridSpec(
            num_scalar_prefetch=0,
            grid=(N, HWp // thw),
            in_specs=[pl.BlockSpec((1, thw, Cp), lambda n, j: (n, j, 0)),
                      pl.BlockSpec((Cp, Cm), lambda n, j: (0, 0)),
                      pl.BlockSpec((Cm, Cp), lambda n, j: (0, 0))],
            out_specs=pl.BlockSpec((1, 1, Cp), lambda n, j: (n, 0, 0)),
            scratch_shapes=[pltpu.VMEM((1, Cp), jnp.float32),     # running sum
                            pltpu.VMEM((1, Cp), jnp.float32)]),   # running max
        compiler_params=pltpu.CompilerParams(
            dimension_semantics=("parallel", "arbitrary")),
    )(x, w1m, w2m)

    return out[:, 0, :C].reshape(N, C, 1, 1)


def reference(x, w1, w2):
    """Pure-JAX reference matching the PyTorch module (eval semantics)."""
    avg = jnp.mean(x, axis=(2, 3))                               # [N, C]
    mx = jnp.max(x, axis=(2, 3))                                 # [N, C]
    hp = jax.lax.Precision.HIGHEST

    def fc(v):
        h = jnp.maximum(jnp.dot(v, w1.T, precision=hp), 0.0)
        return jnp.dot(h, w2.T, precision=hp)

    y = fc(avg) + fc(mx)
    return jax.nn.sigmoid(y)[:, :, None, None]


if __name__ == "__main__":
    key = jax.random.PRNGKey(0)
    kx, k1, k2 = jax.random.split(key, 3)

    N, C, H, W = 2, 64, 16, 16            # in_planes=64, ratio=16 -> hidden=4
    ratio = 16
    Cmid = C // ratio

    x = jax.random.normal(kx, (N, C, H, W), jnp.float32)
    w1 = jax.random.normal(k1, (Cmid, C), jnp.float32) * (1.0 / (C ** 0.5))
    w2 = jax.random.normal(k2, (C, Cmid), jnp.float32) * (1.0 / (Cmid ** 0.5))

    fwd = jax.jit(channel_attention)
    out = jax.block_until_ready(fwd(x, w1, w2))

    ref = reference(x, w1, w2)
    assert out.shape == (N, C, 1, 1), out.shape
    assert bool(jnp.all(jnp.isfinite(out)))
    assert bool(jnp.allclose(out, ref, atol=1e-3, rtol=1e-3)), \
        float(jnp.max(jnp.abs(out - ref)))
    print("KERNEL_OK")
</pallas_src>

<mosaic_0001>
module attributes {stable_mosaic.version = 11 : i64} {
  func.func @_ca_kernel(%arg0: i32, %arg1: i32, %arg2: memref<1x256x128xf32, #tpu.memory_space<vmem>>, %arg3: memref<128x128xf32, #tpu.memory_space<vmem>>, %arg4: memref<128x128xf32, #tpu.memory_space<vmem>>, %arg5: memref<1x1x128xf32, #tpu.memory_space<vmem>>, %arg6: memref<1x128xf32, #tpu.memory_space<vmem>>, %arg7: memref<1x128xf32, #tpu.memory_space<vmem>>) attributes {dimension_semantics = [#tpu.dimension_semantics<parallel>, #tpu.dimension_semantics<arbitrary>], iteration_bounds = array<i64: 2, 1>, scalar_prefetch = 0 : i64, scratch_operands = 2 : i64, tpu.core_type = #tpu.core_type<tc>, window_params = [{transform_indices = @transform_0, window_bounds = array<i64: 1, 256, 128>}, {pipeline_mode = #tpu.pipeline_mode<synchronous>, transform_indices = @transform_1, window_bounds = array<i64: 128, 128>}, {pipeline_mode = #tpu.pipeline_mode<synchronous>, transform_indices = @transform_2, window_bounds = array<i64: 128, 128>}, {transform_indices = @transform_3, window_bounds = array<i64: 1, 1, 128>}]} {
    %c0_i32 = arith.constant 0 : i32
    %0 = arith.cmpi eq, %arg1, %c0_i32 : i32
    %1 = arith.extui %0 : i1 to i32
    %c0_i32_0 = arith.constant 0 : i32
    %2 = arith.cmpi ne, %1, %c0_i32_0 : i32
    scf.if %2 {
      %cst_17 = arith.constant 0.000000e+00 : f32
      %32 = vector.broadcast %cst_17 : f32 to vector<1x128xf32>
      %c0_18 = arith.constant 0 : index
      %c0_19 = arith.constant 0 : index
      %33 = vector.load %arg6[%c0_18, %c0_19] : memref<1x128xf32, #tpu.memory_space<vmem>>, vector<1x128xf32>
      tpu.vector_store %arg6[%c0_18, %c0_19], %32 {strides = array<i32>} : memref<1x128xf32, #tpu.memory_space<vmem>>, vector<1x128xf32>,
      %cst_20 = arith.constant 0xFF800000 : f32
      %34 = vector.broadcast %cst_20 : f32 to vector<1x128xf32>
      %c0_21 = arith.constant 0 : index
      %c0_22 = arith.constant 0 : index
      %35 = vector.load %arg7[%c0_21, %c0_22] : memref<1x128xf32, #tpu.memory_space<vmem>>, vector<1x128xf32>
      tpu.vector_store %arg7[%c0_21, %c0_22], %34 {strides = array<i32>} : memref<1x128xf32, #tpu.memory_space<vmem>>, vector<1x128xf32>,
    } else {
    }
    %c0 = arith.constant 0 : index
    %c0_1 = arith.constant 0 : index
    %c0_2 = arith.constant 0 : index
    %3 = vector.load %arg2[%c0, %c0_1, %c0_2] : memref<1x256x128xf32, #tpu.memory_space<vmem>>, vector<1x256x128xf32>
    %4 = vector.shape_cast %3 : vector<1x256x128xf32> to vector<256x128xf32>
    %c256_i32 = arith.constant 256 : i32
    %5 = arith.muli %arg1, %c256_i32 : i32
    %6 = tpu.iota {dimensions = array<i32: 0>} : vector<256x1xi32>
    %7 = vector.broadcast %5 : i32 to vector<256x1xi32>
    %8 = arith.addi %7, %6 : vector<256x1xi32>
    %c256_i32_3 = arith.constant 256 : i32
    %9 = vector.broadcast %c256_i32_3 : i32 to vector<256x1xi32>
    %10 = arith.cmpi slt, %8, %9 : vector<256x1xi32>
    %c0_4 = arith.constant 0 : index
    %c0_5 = arith.constant 0 : index
    %11 = vector.load %arg6[%c0_4, %c0_5] : memref<1x128xf32, #tpu.memory_space<vmem>>, vector<1x128xf32>
    %cst = arith.constant 0.000000e+00 : f32
    %12 = vector.shape_cast %10 : vector<256x1xi1> to vector<256x1xi1>
    %13 = vector.broadcast %12 : vector<256x1xi1> to vector<256x128xi1>
    %14 = vector.broadcast %cst : f32 to vector<256x128xf32>
    %15 = arith.select %13, %4, %14 : vector<256x128xi1>, vector<256x128xf32>
    %cst_6 = arith.constant dense<0.000000e+00> : vector<128xf32>
    %16 = vector.multi_reduction <add>, %15, %cst_6 [0] : vector<256x128xf32> to vector<128xf32>
    %17 = vector.shape_cast %16 : vector<128xf32> to vector<1x128xf32>
    %18 = arith.addf %11, %17 : vector<1x128xf32>
    %c0_7 = arith.constant 0 : index
    %c0_8 = arith.constant 0 : index
    %19 = vector.load %arg6[%c0_7, %c0_8] : memref<1x128xf32, #tpu.memory_space<vmem>>, vector<1x128xf32>
    tpu.vector_store %arg6[%c0_7, %c0_8], %18 {strides = array<i32>} : memref<1x128xf32, #tpu.memory_space<vmem>>, vector<1x128xf32>,
    %c0_9 = arith.constant 0 : index
    %c0_10 = arith.constant 0 : index
    %20 = vector.load %arg7[%c0_9, %c0_10] : memref<1x128xf32, #tpu.memory_space<vmem>>, vector<1x128xf32>
    %cst_11 = arith.constant 0xFF800000 : f32
    %21 = vector.shape_cast %10 : vector<256x1xi1> to vector<256x1xi1>
    %22 = vector.broadcast %21 : vector<256x1xi1> to vector<256x128xi1>
    %23 = vector.broadcast %cst_11 : f32 to vector<256x128xf32>
    %24 = arith.select %22, %4, %23 : vector<256x128xi1>, vector<256x128xf32>
    %cst_12 = arith.constant dense<0xFF800000> : vector<128xf32>
    %25 = vector.multi_reduction <maximumf>, %24, %cst_12 [0] : vector<256x128xf32> to vector<128xf32>
    %26 = vector.shape_cast %25 : vector<128xf32> to vector<1x128xf32>
    %27 = arith.maximumf %20, %26 : vector<1x128xf32>
    %c0_13 = arith.constant 0 : index
    %c0_14 = arith.constant 0 : index
    %28 = vector.load %arg7[%c0_13, %c0_14] : memref<1x128xf32, #tpu.memory_space<vmem>>, vector<1x128xf32>
    tpu.vector_store %arg7[%c0_13, %c0_14], %27 {strides = array<i32>} : memref<1x128xf32, #tpu.memory_space<vmem>>, vector<1x128xf32>,
    %c0_i32_15 = arith.constant 0 : i32
    %29 = arith.cmpi eq, %arg1, %c0_i32_15 : i32
    %30 = arith.extui %29 : i1 to i32
    %c0_i32_16 = arith.constant 0 : i32
    %31 = arith.cmpi ne, %30, %c0_i32_16 : i32
    scf.if %31 {
      %c0_17 = arith.constant 0 : index
      %c0_18 = arith.constant 0 : index
      %32 = vector.load %arg6[%c0_17, %c0_18] : memref<1x128xf32, #tpu.memory_space<vmem>>, vector<1x128xf32>
      %cst_19 = arith.constant 3.906250e-03 : f32
      %33 = vector.broadcast %cst_19 : f32 to vector<1x128xf32>
      %34 = arith.mulf %32, %33 : vector<1x128xf32>
      %c0_20 = arith.constant 0 : index
      %c0_21 = arith.constant 0 : index
      %35 = vector.load %arg7[%c0_20, %c0_21] : memref<1x128xf32, #tpu.memory_space<vmem>>, vector<1x128xf32>
      %c0_22 = arith.constant 0 : index
      %c0_23 = arith.constant 0 : index
      %36 = vector.load %arg3[%c0_22, %c0_23] : memref<128x128xf32, #tpu.memory_space<vmem>>, vector<128x128xf32>
      %c0_24 = arith.constant 0 : index
      %c0_25 = arith.constant 0 : index
      %37 = vector.load %arg4[%c0_24, %c0_25] : memref<128x128xf32, #tpu.memory_space<vmem>>, vector<128x128xf32>
      %cst_26 = arith.constant dense<0.000000e+00> : vector<1x128xf32>
      %38 = tpu.matmul %34, %36, %cst_26 {dimension_numbers = #tpu.dot_dimension_numbers<[1], [0], [0], [1], [0, 0, 1, 1], [], []>} : vector<1x128xf32>, vector<128x128xf32>, vector<1x128xf32> -> vector<1x128xf32>
      %cst_27 = arith.constant 0.000000e+00 : f32
      %39 = vector.broadcast %cst_27 : f32 to vector<1x128xf32>
      %40 = arith.maximumf %38, %39 : vector<1x128xf32>
      %cst_28 = arith.constant dense<0.000000e+00> : vector<1x128xf32>
      %41 = tpu.matmul %35, %36, %cst_28 {dimension_numbers = #tpu.dot_dimension_numbers<[1], [0], [0], [1], [0, 0, 1, 1], [], []>} : vector<1x128xf32>, vector<128x128xf32>, vector<1x128xf32> -> vector<1x128xf32>
      %cst_29 = arith.constant 0.000000e+00 : f32
      %42 = vector.broadcast %cst_29 : f32 to vector<1x128xf32>
      %43 = arith.maximumf %41, %42 : vector<1x128xf32>
      %cst_30 = arith.constant dense<0.000000e+00> : vector<1x128xf32>
      %44 = tpu.matmul %40, %37, %cst_30 {dimension_numbers = #tpu.dot_dimension_numbers<[1], [0], [0], [1], [0, 0, 1, 1], [], []>} : vector<1x128xf32>, vector<128x128xf32>, vector<1x128xf32> -> vector<1x128xf32>
      %cst_31 = arith.constant dense<0.000000e+00> : vector<1x128xf32>
      %45 = tpu.matmul %43, %37, %cst_31 {dimension_numbers = #tpu.dot_dimension_numbers<[1], [0], [0], [1], [0, 0, 1, 1], [], []>} : vector<1x128xf32>, vector<128x128xf32>, vector<1x128xf32> -> vector<1x128xf32>
      %46 = arith.addf %44, %45 : vector<1x128xf32>
      %cst_32 = arith.constant 0.000000e+00 : f32
      %47 = vector.broadcast %cst_32 : f32 to vector<1x128xf32>
      %48 = arith.subf %47, %46 : vector<1x128xf32>
      %49 = math.exp %48 : vector<1x128xf32>
      %cst_33 = arith.constant 1.000000e+00 : f32
      %50 = vector.broadcast %cst_33 : f32 to vector<1x128xf32>
      %51 = arith.addf %50, %49 : vector<1x128xf32>
      %cst_34 = arith.constant 1.000000e+00 : f32
      %52 = vector.broadcast %cst_34 : f32 to vector<1x128xf32>
      %53 = arith.divf %52, %51 : vector<1x128xf32>
      %c0_35 = arith.constant 0 : index
      %c0_36 = arith.constant 0 : index
      %c0_37 = arith.constant 0 : index
      %54 = vector.load %arg5[%c0_35, %c0_36, %c0_37] : memref<1x1x128xf32, #tpu.memory_space<vmem>>, vector<1x1x128xf32>
      %55 = vector.shape_cast %54 : vector<1x1x128xf32> to vector<1x128xf32>
      %56 = vector.shape_cast %53 : vector<1x128xf32> to vector<1x1x128xf32>
      tpu.vector_store %arg5[%c0_35, %c0_36, %c0_37], %56 {strides = array<i32>} : memref<1x1x128xf32, #tpu.memory_space<vmem>>, vector<1x1x128xf32>,
    } else {
    }
    return
  }
  func.func @transform_0(%arg0: i32, %arg1: i32) -> (i32, i32, i32) {
    %c0_i32 = arith.constant 0 : i32
    %c0_i32_0 = arith.constant 0 : i32
    return %arg0, %arg1, %c0_i32 : i32, i32, i32
  }
  func.func @transform_1(%arg0: i32, %arg1: i32) -> (i32, i32) {
    %c0_i32 = arith.constant 0 : i32
    %c0_i32_0 = arith.constant 0 : i32
    %c0_i32_1 = arith.constant 0 : i32
    return %c0_i32, %c0_i32_0 : i32, i32
  }
  func.func @transform_2(%arg0: i32, %arg1: i32) -> (i32, i32) {
    %c0_i32 = arith.constant 0 : i32
    %c0_i32_0 = arith.constant 0 : i32
    %c0_i32_1 = arith.constant 0 : i32
    return %c0_i32, %c0_i32_0 : i32, i32
  }
  func.func @transform_3(%arg0: i32, %arg1: i32) -> (i32, i32, i32) {
    %c0_i32 = arith.constant 0 : i32
    %c0_i32_0 = arith.constant 0 : i32
    %c0_i32_1 = arith.constant 0 : i32
    return %arg0, %c0_i32, %c0_i32_0 : i32, i32, i32
  }
}

</mosaic_0001>

<llo_original>
// kernel: channel_attention.1
$region0: #{channel_attention.1}
  #allocation0 [shape = 'u32[]', space=smem, size = 0x4, offset = 0x4, fixed_abs, tag = 'smem constant byte address 0x4 - core index']
  #allocation1 [shape = 'u32[144,128]{1,0:T(1,128)}', space=vmem, size = 0x12000, scoped, tag = 'internal scratch']
  #allocation2 [shape = 'f32[1,128]{1,0:T(1,128)}', space=vmem, size = 0x200, scoped, tag = 'scratch operand']
  #allocation3 [shape = 'f32[1,128]{1,0:T(1,128)}', space=vmem, size = 0x200, scoped, tag = 'scratch operand']
  %s0 = inlined_call_operand.vmem [shape: f32[2,256,128], index: 0, kind: input, shape index: {}]
  %s1 = inlined_call_operand.vmem [shape: f32[128,128], index: 1, kind: input, shape index: {}]
  %s2 = inlined_call_operand.vmem [shape: f32[128,128], index: 2, kind: input, shape index: {}]
  %s3 = inlined_call_operand.vmem [shape: f32[2,1,128], index: 3, kind: output, shape index: {}]
  %s4 = sld [smem:[#allocation0]]
  $region53: #{channel_attention.1} parent=0
    _
  %s6 = ssub.s32 1, %s4
  %s7 = scalar_select 0, %s6, %s4
  loop: start=0, step=1, limit=4
  $region2: #{channel_attention.1} parent=0 // loop_pre_header
    _
  $region3: #{channel_attention.1} parent=0 // loop_header
    %s9 = sphi 0, %s13
    %p10 = scmp.ge.s32.totalorder %s9, 4
    %s16 = sphi 0, %s28
    %s17 = sphi 0, %s24
    %s18 = sphi 0, %s16
    %s19 = sphi 0, %s17
    %s20 = sphi 0, %s18
    %s21 = sphi 0, %s19
    %s33 = sphi 0, %s35
    %s36 = sphi 0, %s33
    %s37 = sphi 0, %s36
    %s53 = sphi 0, %s37
    %s57 = sphi 0, %s57
    %s59 = sphi 0, %s57
    %s60 = sphi 0, %s59
    %s74 = sphi 0, %s60
    %s78 = sphi 0, %s78
    %s80 = sphi 0, %s78
    %s81 = sphi 0, %s80
    %s95 = sphi 0, %s81
    %s101 = sphi 0, %s103
    %s104 = sphi 0, %s101
    %s105 = sphi 0, %s104
    %s121 = sphi 0, %s105
  $region4: #{channel_attention.1} parent=0 // loop_header_branch
    %12 = sbr.rel (%p10) target = $region8
  $region5: #{channel_attention.1} parent=0 // loop_body
    %s14 = ssub.s32 %s9, 1
    %s15 = ssub.s32 %s9, 2
    %s22 = sadd.s32 1, %s17
    %p23 = scmp.ge.s32.totalorder %s22, 1
    %s24 = scalar_select %p23, 0, %s22
    %s25 = sadd.s32 1, %s16
    %s26 = scalar_select %p23, %s25, %s16
    %p27 = scmp.ge.s32.totalorder %s26, 2
    %s28 = scalar_select %p27, 0, %s26
    %s29 = ssub.s32 %s16, %s28
    %s30 = ssub.s32 %s17, %s24
    %s31 = sor.u32 %s29, %s30
    %p32 = scmp.eq.s32.totalorder %s31, 0
    %s34 = sadd.s32 %s33, 1
    %s35 = scalar_select %p32, %s33, %s34
    %p38 = pneg %p32
    %p39 = scmp.eq.s32.totalorder %s9, 1
    %p40 = por %p38, %p39
    %p41 = scmp.ne.s32.totalorder %s33, %s36
    %p42 = scmp.eq.s32.totalorder %s9, 0
    %p43 = por %p41, %p42
    %p44 = scmp.ne.s32.totalorder %s33, %s36
    %p45 = scmp.eq.s32.totalorder %s14, 1
    %p46 = por %p44, %p45
    %p47 = scmp.ne.s32.totalorder %s36, %s37
    %p48 = scmp.eq.s32.totalorder %s14, 0
    %p49 = por %p47, %p48
    %p50 = scmp.ne.s32.totalorder %s36, %s37
    %p51 = scmp.eq.s32.totalorder %s15, 1
    %p52 = por %p50, %p51
    %p54 = scmp.ne.s32.totalorder %s37, %s53
    %p55 = scmp.eq.s32.totalorder %s15, 0
    %p56 = por %p54, %p55
    %s58 = sadd.s32 %s57, 1
    %p61 = scmp.eq.s32.totalorder %s9, 1
    %p62 = scmp.ne.s32.totalorder %s57, %s59
    %p63 = scmp.eq.s32.totalorder %s9, 0
    %p64 = por %p62, %p63
    %p65 = scmp.ne.s32.totalorder %s57, %s59
    %p66 = scmp.eq.s32.totalorder %s14, 1
    %p67 = por %p65, %p66
    %p68 = scmp.ne.s32.totalorder %s59, %s60
    %p69 = scmp.eq.s32.totalorder %s14, 0
    %p70 = por %p68, %p69
    %p71 = scmp.ne.s32.totalorder %s59, %s60
    %p72 = scmp.eq.s32.totalorder %s15, 1
    %p73 = por %p71, %p72
    %p75 = scmp.ne.s32.totalorder %s60, %s74
    %p76 = scmp.eq.s32.totalorder %s15, 0
    %p77 = por %p75, %p76
    %s79 = sadd.s32 %s78, 1
    %p82 = scmp.eq.s32.totalorder %s9, 1
    %p83 = scmp.ne.s32.totalorder %s78, %s80
    %p84 = scmp.eq.s32.totalorder %s9, 0
    %p85 = por %p83, %p84
    %p86 = scmp.ne.s32.totalorder %s78, %s80
    %p87 = scmp.eq.s32.totalorder %s14, 1
    %p88 = por %p86, %p87
    %p89 = scmp.ne.s32.totalorder %s80, %s81
    %p90 = scmp.eq.s32.totalorder %s14, 0
    %p91 = por %p89, %p90
    %p92 = scmp.ne.s32.totalorder %s80, %s81
    %p93 = scmp.eq.s32.totalorder %s15, 1
    %p94 = por %p92, %p93
    %p96 = scmp.ne.s32.totalorder %s81, %s95
    %p97 = scmp.eq.s32.totalorder %s15, 0
    %p98 = por %p96, %p97
    %s99 = ssub.s32 %s16, %s28
    %p100 = scmp.eq.s32.totalorder %s99, 0
    %s102 = sadd.s32 %s101, 1
    %s103 = scalar_select %p100, %s101, %s102
    %p106 = pneg %p100
    %p107 = scmp.eq.s32.totalorder %s9, 1
    %p108 = por %p106, %p107
    %p109 = scmp.ne.s32.totalorder %s101, %s104
    %p110 = scmp.eq.s32.totalorder %s9, 0
    %p111 = por %p109, %p110
    %p112 = scmp.ne.s32.totalorder %s101, %s104
    %p113 = scmp.eq.s32.totalorder %s14, 1
    %p114 = por %p112, %p113
    %p115 = scmp.ne.s32.totalorder %s104, %s105
    %p116 = scmp.eq.s32.totalorder %s14, 0
    %p117 = por %p115, %p116
    %p118 = scmp.ne.s32.totalorder %s104, %s105
    %p119 = scmp.eq.s32.totalorder %s15, 1
    %p120 = por %p118, %p119
    %p122 = scmp.ne.s32.totalorder %s105, %s121
    %p123 = scmp.eq.s32.totalorder %s15, 0
    %p124 = por %p122, %p123
    %p125 = scmp.le.s32.totalorder 1, %s9
    %p126 = scmp.lt.s32.totalorder %s9, 3
    %p127 = pnand %p125, %p126
    %p128 = pneg %p127
    // Predicated region
    $region9: #{channel_attention.1} parent=5 // pred_check
      _
    $region10: #{channel_attention.1} parent=5 // pred_check_branch
      %130 = sbr.rel (%p127) target = $region12
    $region11: #{channel_attention.1} parent=5 // pred_region
      %s131 = ssub.s32 %s9, 1
      // Predicated region
      $region13: #{channel_attention.1} parent=11 // pred_check
        %p132 = pneg %p70
      $region14: #{channel_attention.1} parent=11 // pred_check_branch
        %134 = sbr.rel (%p132) target = $region16
      $region15: #{channel_attention.1} parent=11 // pred_region
        _
      $region16: #{channel_attention.1} parent=11 // pred_fallthru
        _
      // Predicated region
      $region17: #{channel_attention.1} parent=11 // pred_check
        %p135 = pneg %p91
      $region18: #{channel_attention.1} parent=11 // pred_check_branch
        %137 = sbr.rel (%p135) target = $region20
      $region19: #{channel_attention.1} parent=11 // pred_region
        _
      $region20: #{channel_attention.1} parent=11 // pred_fallthru
        _
    $region12: #{channel_attention.1} parent=5 // pred_fallthru
      _
    %p138 = scmp.lt.s32.totalorder %s9, 2
    // Predicated region
    $region21: #{channel_attention.1} parent=5 // pred_check
      %p139 = pneg %p138
    $region22: #{channel_attention.1} parent=5 // pred_check_branch
      %141 = sbr.rel (%p139) target = $region24
    $region23: #{channel_attention.1} parent=5 // pred_region
      // Predicated region
      $region25: #{channel_attention.1} parent=23 // pred_check
        %p142 = pneg %p43
      $region26: #{channel_attention.1} parent=23 // pred_check_branch
        %144 = sbr.rel (%p142) target = $region28
      $region27: #{channel_attention.1} parent=23 // pred_region
        %s145 = smul.u32 32, %s17
        %p146 = scmp.lt.s32.totalorder %s16, 1
        %s147 = scalar_select %p146, %s16, 1
        %p148 = scmp.lt.s32.totalorder %s145, 31
        %s149 = scalar_select %p148, %s145, 31
        %s150 = smul.addr %s147, 32
        %s151 = sadd.s32 %s149, %s150
        %s152 = smul.addr %s151, 8
        %s153 = scalar_lea.vmem %s0, %s152
        %s154 = smul.u32 32, %s17
      $region28: #{channel_attention.1} parent=23 // pred_fallthru
        _
    $region24: #{channel_attention.1} parent=5 // pred_fallthru
      _
    %p155 = scmp.le.s32.totalorder 1, %s9
    %p156 = scmp.lt.s32.totalorder %s9, 3
    %p157 = pnand %p155, %p156
    %p158 = pneg %p157
    // Predicated region
    $region29: #{channel_attention.1} parent=5 // pred_check
      _
    $region30: #{channel_attention.1} parent=5 // pred_check_branch
      %160 = sbr.rel (%p157) target = $region32
    $region31: #{channel_attention.1} parent=5 // pred_region
      %s161 = ssub.s32 %s9, 1
      %s162 = smul.u32 32, %s19
      %p163 = scmp.lt.s32.totalorder %s18, 1
      %s164 = scalar_select %p163, %s18, 1
      %p165 = scmp.lt.s32.totalorder %s162, 31
      %s166 = scalar_select %p165, %s162, 31
      %s167 = smul.addr %s164, 32
      %s168 = sadd.s32 %s166, %s167
      %s169 = smul.addr %s168, 8
      %s170 = scalar_lea.vmem %s0, %s169
      %p171 = pneg %p49
      %p172 = pneg %p46
      %p173 = pneg %p70
      %p174 = pneg %p67
      %p175 = pneg %p91
      %p176 = pneg %p88
      %p177 = pneg %p117
      %p178 = pneg %p114
      %p179 = scmp.lt.s32.totalorder %s18, 1
      %s180 = scalar_select %p179, %s18, 1
      %s181 = scalar_lea.vmem %s3, %s180
      %s182 = smul.u32 32, %s19
      %p183 = scmp.lt.s32.totalorder %s18, 1
      %s184 = scalar_select %p183, %s18, 1
      %p185 = scmp.lt.s32.totalorder %s182, 31
      %s186 = scalar_select %p185, %s182, 31
      %s187 = smul.addr %s184, 32
      %s188 = sadd.s32 %s186, %s187
      %s189 = smul.addr %s188, 8
      %s190 = scalar_lea.vmem %s0, %s189
      %s191 = smul.u32 32, %s19
      %p192 = scmp.lt.s32.totalorder %s18, 1
      %s193 = scalar_select %p192, %s18, 1
      %s194 = scalar_lea.vmem %s3, %s193
      %p195 = scmp.eq.s32.totalorder %s19, 0
      // Predicated region
      $region33: #{channel_attention.1} parent=31 // pred_check
        %p196 = pneg %p195
      $region34: #{channel_attention.1} parent=31 // pred_check_branch
        %198 = sbr.rel (%p196) target = $region36
      $region35: #{channel_attention.1} parent=31 // pred_region
        %199 = vst [vmem:[#allocation2] sm:$0x1] 0.0
        %200 = vst [vmem:[#allocation3] sm:$0x1] -inf
      $region36: #{channel_attention.1} parent=31 // pred_fallthru
        _
      %v201 = vld [vmem:[%s190] sm:$0xff]
      %v202 = vld [vmem:[%s190 + $0x8] sm:$0xff]
      %v203 = vld [vmem:[%s190 + $0x10] sm:$0xff]
      %v204 = vld [vmem:[%s190 + $0x18] sm:$0xff]
      %v205 = vld [vmem:[%s190 + $0x20] sm:$0xff]
      %v206 = vld [vmem:[%s190 + $0x28] sm:$0xff]
      %v207 = vld [vmem:[%s190 + $0x30] sm:$0xff]
      %v208 = vld [vmem:[%s190 + $0x38] sm:$0xff]
      %v209 = vld [vmem:[%s190 + $0x40] sm:$0xff]
      %v210 = vld [vmem:[%s190 + $0x48] sm:$0xff]
      %v211 = vld [vmem:[%s190 + $0x50] sm:$0xff]
      %v212 = vld [vmem:[%s190 + $0x58] sm:$0xff]
      %v213 = vld [vmem:[%s190 + $0x60] sm:$0xff]
      %v214 = vld [vmem:[%s190 + $0x68] sm:$0xff]
      %v215 = vld [vmem:[%s190 + $0x70] sm:$0xff]
      %v216 = vld [vmem:[%s190 + $0x78] sm:$0xff]
      %v217 = vld [vmem:[%s190 + $0x80] sm:$0xff]
      %v218 = vld [vmem:[%s190 + $0x88] sm:$0xff]
      %v219 = vld [vmem:[%s190 + $0x90] sm:$0xff]
      %v220 = vld [vmem:[%s190 + $0x98] sm:$0xff]
      %v221 = vld [vmem:[%s190 + $0xa0] sm:$0xff]
      %v222 = vld [vmem:[%s190 + $0xa8] sm:$0xff]
      %v223 = vld [vmem:[%s190 + $0xb0] sm:$0xff]
      %v224 = vld [vmem:[%s190 + $0xb8] sm:$0xff]
      %v225 = vld [vmem:[%s190 + $0xc0] sm:$0xff]
      %v226 = vld [vmem:[%s190 + $0xc8] sm:$0xff]
      %v227 = vld [vmem:[%s190 + $0xd0] sm:$0xff]
      %v228 = vld [vmem:[%s190 + $0xd8] sm:$0xff]
      %v229 = vld [vmem:[%s190 + $0xe0] sm:$0xff]
      %v230 = vld [vmem:[%s190 + $0xe8] sm:$0xff]
      %v231 = vld [vmem:[%s190 + $0xf0] sm:$0xff]
      %v232 = vld [vmem:[%s190 + $0xf8] sm:$0xff]
      %s233 = smul.u32 %s19, 256
      %v234 = vlaneseq
      %v235 = vshrl.u32 %v234, 7
      %v236 = vadd.s32 %v235, 8
      %v237 = vadd.s32 %v235, 16
      %v238 = vadd.s32 %v235, 24
      %v239 = vadd.s32 %v235, 32
      %v240 = vadd.s32 %v235, 40
      %v241 = vadd.s32 %v235, 48
      %v242 = vadd.s32 %v235, 56
      %v243 = vadd.s32 %v235, 64
      %v244 = vadd.s32 %v235, 72
      %v245 = vadd.s32 %v235, 80
      %v246 = vadd.s32 %v235, 88
      %v247 = vadd.s32 %v235, 96
      %v248 = vadd.s32 %v235, 104
      %v249 = vadd.s32 %v235, 112
      %v250 = vadd.s32 %v235, 120
      %v251 = vadd.s32 %v235, 128
      %v252 = vadd.s32 %v235, 136
      %v253 = vadd.s32 %v235, 144
      %v254 = vadd.s32 %v235, 152
      %v255 = vadd.s32 %v235, 160
      %v256 = vadd.s32 %v235, 168
      %v257 = vadd.s32 %v235, 176
      %v258 = vadd.s32 %v235, 184
      %v259 = vadd.s32 %v235, 192
      %v260 = vadd.s32 %v235, 200
      %v261 = vadd.s32 %v235, 208
      %v262 = vadd.s32 %v235, 216
      %v263 = vadd.s32 %v235, 224
      %v264 = vadd.s32 %v235, 232
      %v265 = vadd.s32 %v235, 240
      %v266 = vadd.s32 %v235, 248
      %v267 = vstv %s233
      %v268 = vadd.s32 %v267, %v235
      %v269 = vadd.s32 %v267, %v236
      %v270 = vadd.s32 %v267, %v237
      %v271 = vadd.s32 %v267, %v238
      %v272 = vadd.s32 %v267, %v239
      %v273 = vadd.s32 %v267, %v240
      %v274 = vadd.s32 %v267, %v241
      %v275 = vadd.s32 %v267, %v242
      %v276 = vadd.s32 %v267, %v243
      %v277 = vadd.s32 %v267, %v244
      %v278 = vadd.s32 %v267, %v245
      %v279 = vadd.s32 %v267, %v246
      %v280 = vadd.s32 %v267, %v247
      %v281 = vadd.s32 %v267, %v248
      %v282 = vadd.s32 %v267, %v249
      %v283 = vadd.s32 %v267, %v250
      %v284 = vadd.s32 %v267, %v251
      %v285 = vadd.s32 %v267, %v252
      %v286 = vadd.s32 %v267, %v253
      %v287 = vadd.s32 %v267, %v254
      %v288 = vadd.s32 %v267, %v255
      %v289 = vadd.s32 %v267, %v256
      %v290 = vadd.s32 %v267, %v257
      %v291 = vadd.s32 %v267, %v258
      %v292 = vadd.s32 %v267, %v259
      %v293 = vadd.s32 %v267, %v260
      %v294 = vadd.s32 %v267, %v261
      %v295 = vadd.s32 %v267, %v262
      %v296 = vadd.s32 %v267, %v263
      %v297 = vadd.s32 %v267, %v264
      %v298 = vadd.s32 %v267, %v265
      %v299 = vadd.s32 %v267, %v266
      %vm300 = vcmp.lt.s32.totalorder %v268, 256
      %vm301 = vcmp.lt.s32.totalorder %v269, 256
      %vm302 = vcmp.lt.s32.totalorder %v270, 256
      %vm303 = vcmp.lt.s32.totalorder %v271, 256
      %vm304 = vcmp.lt.s32.totalorder %v272, 256
      %vm305 = vcmp.lt.s32.totalorder %v273, 256
      %vm306 = vcmp.lt.s32.totalorder %v274, 256
      %vm307 = vcmp.lt.s32.totalorder %v275, 256
      %vm308 = vcmp.lt.s32.totalorder %v276, 256
      %vm309 = vcmp.lt.s32.totalorder %v277, 256
      %vm310 = vcmp.lt.s32.totalorder %v278, 256
      %vm311 = vcmp.lt.s32.totalorder %v279, 256
      %vm312 = vcmp.lt.s32.totalorder %v280, 256
      %vm313 = vcmp.lt.s32.totalorder %v281, 256
      %vm314 = vcmp.lt.s32.totalorder %v282, 256
      %vm315 = vcmp.lt.s32.totalorder %v283, 256
      %vm316 = vcmp.lt.s32.totalorder %v284, 256
      %vm317 = vcmp.lt.s32.totalorder %v285, 256
      %vm318 = vcmp.lt.s32.totalorder %v286, 256
      %vm319 = vcmp.lt.s32.totalorder %v287, 256
      %vm320 = vcmp.lt.s32.totalorder %v288, 256
      %vm321 = vcmp.lt.s32.totalorder %v289, 256
      %vm322 = vcmp.lt.s32.totalorder %v290, 256
      %vm323 = vcmp.lt.s32.totalorder %v291, 256
      %vm324 = vcmp.lt.s32.totalorder %v292, 256
      %vm325 = vcmp.lt.s32.totalorder %v293, 256
      %vm326 = vcmp.lt.s32.totalorder %v294, 256
      %vm327 = vcmp.lt.s32.totalorder %v295, 256
      %vm328 = vcmp.lt.s32.totalorder %v296, 256
      %vm329 = vcmp.lt.s32.totalorder %v297, 256
      %vm330 = vcmp.lt.s32.totalorder %v298, 256
      %vm331 = vcmp.lt.s32.totalorder %v299, 256
      %v332 = vld [vmem:[#allocation2] sm:$0x1]
      %v333 = vsel %vm300, 1, 0
      %v334 = vsel %vm301, 1, 0
      %v335 = vsel %vm302, 1, 0
      %v336 = vsel %vm303, 1, 0
      %v337 = vsel %vm304, 1, 0
      %v338 = vsel %vm305, 1, 0
      %v339 = vsel %vm306, 1, 0
      %v340 = vsel %vm307, 1, 0
      %v341 = vsel %vm308, 1, 0
      %v342 = vsel %vm309, 1, 0
      %v343 = vsel %vm310, 1, 0
      %v344 = vsel %vm311, 1, 0
      %v345 = vsel %vm312, 1, 0
      %v346 = vsel %vm313, 1, 0
      %v347 = vsel %vm314, 1, 0
      %v348 = vsel %vm315, 1, 0
      %v349 = vsel %vm316, 1, 0
      %v350 = vsel %vm317, 1, 0
      %v351 = vsel %vm318, 1, 0
      %v352 = vsel %vm319, 1, 0
      %v353 = vsel %vm320, 1, 0
      %v354 = vsel %vm321, 1, 0
      %v355 = vsel %vm322, 1, 0
      %v356 = vsel %vm323, 1, 0
      %v357 = vsel %vm324, 1, 0
      %v358 = vsel %vm325, 1, 0
      %v359 = vsel %vm326, 1, 0
      %v360 = vsel %vm327, 1, 0
      %v361 = vsel %vm328, 1, 0
      %v362 = vsel %vm329, 1, 0
      %v363 = vsel %vm330, 1, 0
      %v364 = vsel %vm331, 1, 0
      %vm365 = vcmp.eq.s32.totalorder %v333, 1
      %vm366 = vcmp.eq.s32.totalorder %v334, 1
      %vm367 = vcmp.eq.s32.totalorder %v335, 1
      %vm368 = vcmp.eq.s32.totalorder %v336, 1
      %vm369 = vcmp.eq.s32.totalorder %v337, 1
      %vm370 = vcmp.eq.s32.totalorder %v338, 1
      %vm371 = vcmp.eq.s32.totalorder %v339, 1
      %vm372 = vcmp.eq.s32.totalorder %v340, 1
      %vm373 = vcmp.eq.s32.totalorder %v341, 1
      %vm374 = vcmp.eq.s32.totalorder %v342, 1
      %vm375 = vcmp.eq.s32.totalorder %v343, 1
      %vm376 = vcmp.eq.s32.totalorder %v344, 1
      %vm377 = vcmp.eq.s32.totalorder %v345, 1
      %vm378 = vcmp.eq.s32.totalorder %v346, 1
      %vm379 = vcmp.eq.s32.totalorder %v347, 1
      %vm380 = vcmp.eq.s32.totalorder %v348, 1
      %vm381 = vcmp.eq.s32.totalorder %v349, 1
      %vm382 = vcmp.eq.s32.totalorder %v350, 1
      %vm383 = vcmp.eq.s32.totalorder %v351, 1
      %vm384 = vcmp.eq.s32.totalorder %v352, 1
      %vm385 = vcmp.eq.s32.totalorder %v353, 1
      %vm386 = vcmp.eq.s32.totalorder %v354, 1
      %vm387 = vcmp.eq.s32.totalorder %v355, 1
      %vm388 = vcmp.eq.s32.totalorder %v356, 1
      %vm389 = vcmp.eq.s32.totalorder %v357, 1
      %vm390 = vcmp.eq.s32.totalorder %v358, 1
      %vm391 = vcmp.eq.s32.totalorder %v359, 1
      %vm392 = vcmp.eq.s32.totalorder %v360, 1
      %vm393 = vcmp.eq.s32.totalorder %v361, 1
      %vm394 = vcmp.eq.s32.totalorder %v362, 1
      %vm395 = vcmp.eq.s32.totalorder %v363, 1
      %vm396 = vcmp.eq.s32.totalorder %v364, 1
      %v397 = vsel %vm365, %v201, 0.0
      %v398 = vsel %vm366, %v202, 0.0
      %v399 = vsel %vm367, %v203, 0.0
      %v400 = vsel %vm368, %v204, 0.0
      %v401 = vsel %vm369, %v205, 0.0
      %v402 = vsel %vm370, %v206, 0.0
      %v403 = vsel %vm371, %v207, 0.0
      %v404 = vsel %vm372, %v208, 0.0
      %v405 = vsel %vm373, %v209, 0.0
      %v406 = vsel %vm374, %v210, 0.0
      %v407 = vsel %vm375, %v211, 0.0
      %v408 = vsel %vm376, %v212, 0.0
      %v409 = vsel %vm377, %v213, 0.0
      %v410 = vsel %vm378, %v214, 0.0
      %v411 = vsel %vm379, %v215, 0.0
      %v412 = vsel %vm380, %v216, 0.0
      %v413 = vsel %vm381, %v217, 0.0
      %v414 = vsel %vm382, %v218, 0.0
      %v415 = vsel %vm383, %v219, 0.0
      %v416 = vsel %vm384, %v220, 0.0
      %v417 = vsel %vm385, %v221, 0.0
      %v418 = vsel %vm386, %v222, 0.0
      %v419 = vsel %vm387, %v223, 0.0
      %v420 = vsel %vm388, %v224, 0.0
      %v421 = vsel %vm389, %v225, 0.0
      %v422 = vsel %vm390, %v226, 0.0
      %v423 = vsel %vm391, %v227, 0.0
      %v424 = vsel %vm392, %v228, 0.0
      %v425 = vsel %vm393, %v229, 0.0
      %v426 = vsel %vm394, %v230, 0.0
      %v427 = vsel %vm395, %v231, 0.0
      %v428 = vsel %vm396, %v232, 0.0
      %v429 = vadd.f32 %v397, %v398
      %v430 = vadd.f32 %v429, %v399
      %v431 = vadd.f32 %v430, %v400
      %v432 = vadd.f32 %v431, %v401
      %v433 = vadd.f32 %v432, %v402
      %v434 = vadd.f32 %v433, %v403
      %v435 = vadd.f32 %v434, %v404
      %v436 = vadd.f32 %v435, %v405
      %v437 = vadd.f32 %v436, %v406
      %v438 = vadd.f32 %v437, %v407
      %v439 = vadd.f32 %v438, %v408
      %v440 = vadd.f32 %v439, %v409
      %v441 = vadd.f32 %v440, %v410
      %v442 = vadd.f32 %v441, %v411
      %v443 = vadd.f32 %v442, %v412
      %v444 = vadd.f32 %v443, %v413
      %v445 = vadd.f32 %v444, %v414
      %v446 = vadd.f32 %v445, %v415
      %v447 = vadd.f32 %v446, %v416
      %v448 = vadd.f32 %v447, %v417
      %v449 = vadd.f32 %v448, %v418
      %v450 = vadd.f32 %v449, %v419
      %v451 = vadd.f32 %v450, %v420
      %v452 = vadd.f32 %v451, %v421
      %v453 = vadd.f32 %v452, %v422
      %v454 = vadd.f32 %v453, %v423
      %v455 = vadd.f32 %v454, %v424
      %v456 = vadd.f32 %v455, %v425
      %v457 = vadd.f32 %v456, %v426
      %v458 = vadd.f32 %v457, %v427
      %v459 = vadd.f32 %v458, %v428
      %v460 = vrot.slane %v459, 4
      %v461 = vadd.f32 %v459, %v460
      %v462 = vrot.slane %v461, 2
      %v463 = vadd.f32 %v461, %v462
      %v464 = vrot.slane %v463, 1
      %v465 = vadd.f32 %v463, %v464
      %v466 = vadd.f32 %v332, %v465
      %467 = vst [vmem:[#allocation2] sm:$0x1] %v466
      %v468 = vld [vmem:[#allocation3] sm:$0x1]
      %v469 = vsel %vm365, %v201, -inf
      %v470 = vsel %vm366, %v202, -inf
      %v471 = vsel %vm367, %v203, -inf
      %v472 = vsel %vm368, %v204, -inf
      %v473 = vsel %vm369, %v205, -inf
      %v474 = vsel %vm370, %v206, -inf
      %v475 = vsel %vm371, %v207, -inf
      %v476 = vsel %vm372, %v208, -inf
      %v477 = vsel %vm373, %v209, -inf
      %v478 = vsel %vm374, %v210, -inf
      %v479 = vsel %vm375, %v211, -inf
      %v480 = vsel %vm376, %v212, -inf
      %v481 = vsel %vm377, %v213, -inf
      %v482 = vsel %vm378, %v214, -inf
      %v483 = vsel %vm379, %v215, -inf
      %v484 = vsel %vm380, %v216, -inf
      %v485 = vsel %vm381, %v217, -inf
      %v486 = vsel %vm382, %v218, -inf
      %v487 = vsel %vm383, %v219, -inf
      %v488 = vsel %vm384, %v220, -inf
      %v489 = vsel %vm385, %v221, -inf
      %v490 = vsel %vm386, %v222, -inf
      %v491 = vsel %vm387, %v223, -inf
      %v492 = vsel %vm388, %v224, -inf
      %v493 = vsel %vm389, %v225, -inf
      %v494 = vsel %vm390, %v226, -inf
      %v495 = vsel %vm391, %v227, -inf
      %v496 = vsel %vm392, %v228, -inf
      %v497 = vsel %vm393, %v229, -inf
      %v498 = vsel %vm394, %v230, -inf
      %v499 = vsel %vm395, %v231, -inf
      %v500 = vsel %vm396, %v232, -inf
      %v501 = vmax.f32 %v469, %v473
      %v502 = vmax.f32 %v470, %v474
      %v503 = vmax.f32 %v471, %v475
      %v504 = vmax.f32 %v472, %v476
      %v505 = vmax.f32 %v501, %v477
      %v506 = vmax.f32 %v502, %v478
      %v507 = vmax.f32 %v503, %v479
      %v508 = vmax.f32 %v504, %v480
      %v509 = vmax.f32 %v505, %v481
      %v510 = vmax.f32 %v506, %v482
      %v511 = vmax.f32 %v507, %v483
      %v512 = vmax.f32 %v508, %v484
      %v513 = vmax.f32 %v509, %v485
      %v514 = vmax.f32 %v510, %v486
      %v515 = vmax.f32 %v511, %v487
      %v516 = vmax.f32 %v512, %v488
      %v517 = vmax.f32 %v513, %v489
      %v518 = vmax.f32 %v514, %v490
      %v519 = vmax.f32 %v515, %v491
      %v520 = vmax.f32 %v516, %v492
      %v521 = vmax.f32 %v517, %v493
      %v522 = vmax.f32 %v518, %v494
      %v523 = vmax.f32 %v519, %v495
      %v524 = vmax.f32 %v520, %v496
      %v525 = vmax.f32 %v521, %v497
      %v526 = vmax.f32 %v522, %v498
      %v527 = vmax.f32 %v523, %v499
      %v528 = vmax.f32 %v524, %v500
      %v529 = vmax.f32 %v525, %v526
      %v530 = vmax.f32 %v527, %v528
      %v531 = vmax.f32 %v529, %v530
      %v532 = vrot.slane %v531, 4
      %v533 = vmax.f32 %v531, %v532
      %v534 = vrot.slane %v533, 2
      %v535 = vmax.f32 %v533, %v534
      %v536 = vrot.slane %v535, 1
      %v537 = vmax.f32 %v535, %v536
      %v538 = vmax.f32 %v468, %v537
      %539 = vst [vmem:[#allocation3] sm:$0x1] %v538
      // Predicated region
      $region37: #{channel_attention.1} parent=31 // pred_check
        %p540 = pneg %p195
      $region38: #{channel_attention.1} parent=31 // pred_check_branch
        %542 = sbr.rel (%p540) target = $region40
      $region39: #{channel_attention.1} parent=31 // pred_region
        %v543 = vld [vmem:[#allocation2] sm:$0x1]
        %v544 = vmul.f32 %v543, 0.00390625
        %v545 = vld [vmem:[#allocation3] sm:$0x1]
        %v546 = vld [vmem:[%s1] sm:$0xff]
        %v547 = vld [vmem:[%s1 + $0x8] sm:$0xff]
        %v548 = vld [vmem:[%s1 + $0x10] sm:$0xff]
        %v549 = vld [vmem:[%s1 + $0x18] sm:$0xff]
        %v550 = vld [vmem:[%s1 + $0x20] sm:$0xff]
        %v551 = vld [vmem:[%s1 + $0x28] sm:$0xff]
        %v552 = vld [vmem:[%s1 + $0x30] sm:$0xff]
        %v553 = vld [vmem:[%s1 + $0x38] sm:$0xff]
        %v554 = vld [vmem:[%s1 + $0x40] sm:$0xff]
        %v555 = vld [vmem:[%s1 + $0x48] sm:$0xff]
        %v556 = vld [vmem:[%s1 + $0x50] sm:$0xff]
        %v557 = vld [vmem:[%s1 + $0x58] sm:$0xff]
        %v558 = vld [vmem:[%s1 + $0x60] sm:$0xff]
        %v559 = vld [vmem:[%s1 + $0x68] sm:$0xff]
        %v560 = vld [vmem:[%s1 + $0x70] sm:$0xff]
        %v561 = vld [vmem:[%s1 + $0x78] sm:$0xff]
        %v562 = vld [vmem:[%s2] sm:$0xff]
        %v563 = vld [vmem:[%s2 + $0x8] sm:$0xff]
        %v564 = vld [vmem:[%s2 + $0x10] sm:$0xff]
        %v565 = vld [vmem:[%s2 + $0x18] sm:$0xff]
        %v566 = vld [vmem:[%s2 + $0x20] sm:$0xff]
        %v567 = vld [vmem:[%s2 + $0x28] sm:$0xff]
        %v568 = vld [vmem:[%s2 + $0x30] sm:$0xff]
        %v569 = vld [vmem:[%s2 + $0x38] sm:$0xff]
        %v570 = vld [vmem:[%s2 + $0x40] sm:$0xff]
        %v571 = vld [vmem:[%s2 + $0x48] sm:$0xff]
        %v572 = vld [vmem:[%s2 + $0x50] sm:$0xff]
        %v573 = vld [vmem:[%s2 + $0x58] sm:$0xff]
        %v574 = vld [vmem:[%s2 + $0x60] sm:$0xff]
        %v575 = vld [vmem:[%s2 + $0x68] sm:$0xff]
        %v576 = vld [vmem:[%s2 + $0x70] sm:$0xff]
        %v577 = vld [vmem:[%s2 + $0x78] sm:$0xff]
        %578 = vmatprep.subr.mxu0 0.0
        %579 = vmatpush1.msra.mxu0 %v561
        %580 = vmatprep.subr.mxu0 0.0
        %581 = vmatpush1.msra.mxu0 %v560
        %582 = vmatprep.subr.mxu0 0.0
        %583 = vmatpush1.msra.mxu0 %v559
        %584 = vmatprep.subr.mxu0 0.0
        %585 = vmatpush1.msra.mxu0 %v558
        %586 = vmatprep.subr.mxu0 0.0
        %587 = vmatpush1.msra.mxu0 %v557
        %588 = vmatprep.subr.mxu0 0.0
        %589 = vmatpush1.msra.mxu0 %v556
        %590 = vmatprep.subr.mxu0 0.0
        %591 = vmatpush1.msra.mxu0 %v555
        %592 = vmatprep.subr.mxu0 0.0
        %593 = vmatpush1.msra.mxu0 %v554
        %594 = vmatprep.subr.mxu0 0.0
        %595 = vmatpush1.msra.mxu0 %v553
        %596 = vmatprep.subr.mxu0 0.0
        %597 = vmatpush1.msra.mxu0 %v552
        %598 = vmatprep.subr.mxu0 0.0
        %599 = vmatpush1.msra.mxu0 %v551
        %600 = vmatprep.subr.mxu0 0.0
        %601 = vmatpush1.msra.mxu0 %v550
        %602 = vmatprep.subr.mxu0 0.0
        %603 = vmatpush1.msra.mxu0 %v549
        %604 = vmatprep.subr.mxu0 0.0
        %605 = vmatpush1.msra.mxu0 %v548
        %606 = vmatprep.subr.mxu0 0.0
        %607 = vmatpush1.msra.mxu0 %v547
        %608 = vmatprep.subr.mxu0 0.0
        %609 = vmatpush1.msra.mxu0 %v546
        %610 = vmatprep.subr.mxu0 0.0
        %611 = vmatpush2.msra.mxu0 0.0
        %612 = vmatprep.subr.mxu0 0.0
        %613 = vmatpush2.msra.mxu0 0.0
        %614 = vmatprep.subr.mxu0 0.0
        %615 = vmatpush2.msra.mxu0 0.0
        %616 = vmatprep.subr.mxu0 0.0
        %617 = vmatpush2.msra.mxu0 0.0
        %618 = vmatprep.subr.mxu0 0.0
        %619 = vmatpush2.msra.mxu0 0.0
        %620 = vmatprep.subr.mxu0 0.0
        %621 = vmatpush2.msra.mxu0 0.0
        %622 = vmatprep.subr.mxu0 0.0
        %623 = vmatpush2.msra.mxu0 0.0
        %624 = vmatprep.subr.mxu0 0.0
        %625 = vmatpush2.msra.mxu0 0.0
        %626 = vmatprep.subr.mxu0 0.0
        %627 = vmatpush2.msra.mxu0 0.0
        %628 = vmatprep.subr.mxu0 0.0
        %629 = vmatpush2.msra.mxu0 0.0
        %630 = vmatprep.subr.mxu0 0.0
        %631 = vmatpush2.msra.mxu0 0.0
        %632 = vmatprep.subr.mxu0 0.0
        %633 = vmatpush2.msra.mxu0 0.0
        %634 = vmatprep.subr.mxu0 0.0
        %635 = vmatpush2.msra.mxu0 0.0
        %636 = vmatprep.subr.mxu0 0.0
        %637 = vmatpush2.msra.mxu0 0.0
        %638 = vmatprep.subr.mxu0 0.0
        %639 = vmatpush2.msra.mxu0 0.0
        %640 = vmatprep.subr.mxu0 0.0
        %641 = vmatpush2.msra.mxu0 0.0
        %642 = vmatprep.mubr.f32.mxu0 0.0
        %643 = vmatmul.mubr.f32.gmra.mxu0 %v544
        %v644 = vpop.f32.mrf.mxu0
        %v645 = vadd.f32 0.0, %v644
        %v646 = vpop.f32.mrf.mxu0
        %647 = vdwg.mxu0
        %v648 = vmax.f32 %v645, 0.0
        %649 = vmatprep.subr.mxu0 0.0
        %650 = vmatpush1.msra.mxu0 %v561
        %651 = vmatprep.subr.mxu0 0.0
        %652 = vmatpush1.msra.mxu0 %v560
        %653 = vmatprep.subr.mxu0 0.0
        %654 = vmatpush1.msra.mxu0 %v559
        %655 = vmatprep.subr.mxu0 0.0
        %656 = vmatpush1.msra.mxu0 %v558
        %657 = vmatprep.subr.mxu0 0.0
        %658 = vmatpush1.msra.mxu0 %v557
        %659 = vmatprep.subr.mxu0 0.0
        %660 = vmatpush1.msra.mxu0 %v556
        %661 = vmatprep.subr.mxu0 0.0
        %662 = vmatpush1.msra.mxu0 %v555
        %663 = vmatprep.subr.mxu0 0.0
        %664 = vmatpush1.msra.mxu0 %v554
        %665 = vmatprep.subr.mxu0 0.0
        %666 = vmatpush1.msra.mxu0 %v553
        %667 = vmatprep.subr.mxu0 0.0
        %668 = vmatpush1.msra.mxu0 %v552
        %669 = vmatprep.subr.mxu0 0.0
        %670 = vmatpush1.msra.mxu0 %v551
        %671 = vmatprep.subr.mxu0 0.0
        %672 = vmatpush1.msra.mxu0 %v550
        %673 = vmatprep.subr.mxu0 0.0
        %674 = vmatpush1.msra.mxu0 %v549
        %675 = vmatprep.subr.mxu0 0.0
        %676 = vmatpush1.msra.mxu0 %v548
        %677 = vmatprep.subr.mxu0 0.0
        %678 = vmatpush1.msra.mxu0 %v547
        %679 = vmatprep.subr.mxu0 0.0
        %680 = vmatpush1.msra.mxu0 %v546
        %681 = vmatprep.subr.mxu0 0.0
        %682 = vmatpush2.msra.mxu0 0.0
        %683 = vmatprep.subr.mxu0 0.0
        %684 = vmatpush2.msra.mxu0 0.0
        %685 = vmatprep.subr.mxu0 0.0
        %686 = vmatpush2.msra.mxu0 0.0
        %687 = vmatprep.subr.mxu0 0.0
        %688 = vmatpush2.msra.mxu0 0.0
        %689 = vmatprep.subr.mxu0 0.0
        %690 = vmatpush2.msra.mxu0 0.0
        %691 = vmatprep.subr.mxu0 0.0
        %692 = vmatpush2.msra.mxu0 0.0
        %693 = vmatprep.subr.mxu0 0.0
        %694 = vmatpush2.msra.mxu0 0.0
        %695 = vmatprep.subr.mxu0 0.0
        %696 = vmatpush2.msra.mxu0 0.0
        %697 = vmatprep.subr.mxu0 0.0
        %698 = vmatpush2.msra.mxu0 0.0
        %699 = vmatprep.subr.mxu0 0.0
        %700 = vmatpush2.msra.mxu0 0.0
        %701 = vmatprep.subr.mxu0 0.0
        %702 = vmatpush2.msra.mxu0 0.0
        %703 = vmatprep.subr.mxu0 0.0
        %704 = vmatpush2.msra.mxu0 0.0
        %705 = vmatprep.subr.mxu0 0.0
        %706 = vmatpush2.msra.mxu0 0.0
        %707 = vmatprep.subr.mxu0 0.0
        %708 = vmatpush2.msra.mxu0 0.0
        %709 = vmatprep.subr.mxu0 0.0
        %710 = vmatpush2.msra.mxu0 0.0
        %711 = vmatprep.subr.mxu0 0.0
        %712 = vmatpush2.msra.mxu0 0.0
        %713 = vmatprep.mubr.f32.mxu0 0.0
        %714 = vmatmul.mubr.f32.gmra.mxu0 %v545
        %v715 = vpop.f32.mrf.mxu0
        %v716 = vadd.f32 0.0, %v715
        %v717 = vpop.f32.mrf.mxu0
        %718 = vdwg.mxu0
        %v719 = vmax.f32 %v716, 0.0
        %720 = vmatprep.subr.mxu0 0.0
        %721 = vmatpush1.msra.mxu0 %v577
        %722 = vmatprep.subr.mxu0 0.0
        %723 = vmatpush1.msra.mxu0 %v576
        %724 = vmatprep.subr.mxu0 0.0
        %725 = vmatpush1.msra.mxu0 %v575
        %726 = vmatprep.subr.mxu0 0.0
        %727 = vmatpush1.msra.mxu0 %v574
        %728 = vmatprep.subr.mxu0 0.0
        %729 = vmatpush1.msra.mxu0 %v573
        %730 = vmatprep.subr.mxu0 0.0
        %731 = vmatpush1.msra.mxu0 %v572
        %732 = vmatprep.subr.mxu0 0.0
        %733 = vmatpush1.msra.mxu0 %v571
        %734 = vmatprep.subr.mxu0 0.0
        %735 = vmatpush1.msra.mxu0 %v570
        %736 = vmatprep.subr.mxu0 0.0
        %737 = vmatpush1.msra.mxu0 %v569
        %738 = vmatprep.subr.mxu0 0.0
        %739 = vmatpush1.msra.mxu0 %v568
        %740 = vmatprep.subr.mxu0 0.0
        %741 = vmatpush1.msra.mxu0 %v567
        %742 = vmatprep.subr.mxu0 0.0
        %743 = vmatpush1.msra.mxu0 %v566
        %744 = vmatprep.subr.mxu0 0.0
        %745 = vmatpush1.msra.mxu0 %v565
        %746 = vmatprep.subr.mxu0 0.0
        %747 = vmatpush1.msra.mxu0 %v564
        %748 = vmatprep.subr.mxu0 0.0
        %749 = vmatpush1.msra.mxu0 %v563
        %750 = vmatprep.subr.mxu0 0.0
        %751 = vmatpush1.msra.mxu0 %v562
        %752 = vmatprep.subr.mxu0 0.0
        %753 = vmatpush2.msra.mxu0 0.0
        %754 = vmatprep.subr.mxu0 0.0
        %755 = vmatpush2.msra.mxu0 0.0
        %756 = vmatprep.subr.mxu0 0.0
        %757 = vmatpush2.msra.mxu0 0.0
        %758 = vmatprep.subr.mxu0 0.0
        %759 = vmatpush2.msra.mxu0 0.0
        %760 = vmatprep.subr.mxu0 0.0
        %761 = vmatpush2.msra.mxu0 0.0
        %762 = vmatprep.subr.mxu0 0.0
        %763 = vmatpush2.msra.mxu0 0.0
        %764 = vmatprep.subr.mxu0 0.0
        %765 = vmatpush2.msra.mxu0 0.0
        %766 = vmatprep.subr.mxu0 0.0
        %767 = vmatpush2.msra.mxu0 0.0
        %768 = vmatprep.subr.mxu0 0.0
        %769 = vmatpush2.msra.mxu0 0.0
        %770 = vmatprep.subr.mxu0 0.0
        %771 = vmatpush2.msra.mxu0 0.0
        %772 = vmatprep.subr.mxu0 0.0
        %773 = vmatpush2.msra.mxu0 0.0
        %774 = vmatprep.subr.mxu0 0.0
        %775 = vmatpush2.msra.mxu0 0.0
        %776 = vmatprep.subr.mxu0 0.0
        %777 = vmatpush2.msra.mxu0 0.0
        %778 = vmatprep.subr.mxu0 0.0
        %779 = vmatpush2.msra.mxu0 0.0
        %780 = vmatprep.subr.mxu0 0.0
        %781 = vmatpush2.msra.mxu0 0.0
        %782 = vmatprep.subr.mxu0 0.0
        %783 = vmatpush2.msra.mxu0 0.0
        %784 = vmatprep.mubr.f32.mxu0 0.0
        %785 = vmatmul.mubr.f32.gmra.mxu0 %v719
        %v786 = vpop.f32.mrf.mxu0
        %v787 = vadd.f32 0.0, %v786
        %v788 = vpop.f32.mrf.mxu0
        %789 = vdwg.mxu0
        %790 = vmatprep.subr.mxu0 0.0
        %791 = vmatpush1.msra.mxu0 %v577
        %792 = vmatprep.subr.mxu0 0.0
        %793 = vmatpush1.msra.mxu0 %v576
        %794 = vmatprep.subr.mxu0 0.0
        %795 = vmatpush1.msra.mxu0 %v575
        %796 = vmatprep.subr.mxu0 0.0
        %797 = vmatpush1.msra.mxu0 %v574
        %798 = vmatprep.subr.mxu0 0.0
        %799 = vmatpush1.msra.mxu0 %v573
        %800 = vmatprep.subr.mxu0 0.0
        %801 = vmatpush1.msra.mxu0 %v572
        %802 = vmatprep.subr.mxu0 0.0
        %803 = vmatpush1.msra.mxu0 %v571
        %804 = vmatprep.subr.mxu0 0.0
        %805 = vmatpush1.msra.mxu0 %v570
        %806 = vmatprep.subr.mxu0 0.0
        %807 = vmatpush1.msra.mxu0 %v569
        %808 = vmatprep.subr.mxu0 0.0
        %809 = vmatpush1.msra.mxu0 %v568
        %810 = vmatprep.subr.mxu0 0.0
        %811 = vmatpush1.msra.mxu0 %v567
        %812 = vmatprep.subr.mxu0 0.0
        %813 = vmatpush1.msra.mxu0 %v566
        %814 = vmatprep.subr.mxu0 0.0
        %815 = vmatpush1.msra.mxu0 %v565
        %816 = vmatprep.subr.mxu0 0.0
        %817 = vmatpush1.msra.mxu0 %v564
        %818 = vmatprep.subr.mxu0 0.0
        %819 = vmatpush1.msra.mxu0 %v563
        %820 = vmatprep.subr.mxu0 0.0
        %821 = vmatpush1.msra.mxu0 %v562
        %822 = vmatprep.subr.mxu0 0.0
        %823 = vmatpush2.msra.mxu0 0.0
        %824 = vmatprep.subr.mxu0 0.0
        %825 = vmatpush2.msra.mxu0 0.0
        %826 = vmatprep.subr.mxu0 0.0
        %827 = vmatpush2.msra.mxu0 0.0
        %828 = vmatprep.subr.mxu0 0.0
        %829 = vmatpush2.msra.mxu0 0.0
        %830 = vmatprep.subr.mxu0 0.0
        %831 = vmatpush2.msra.mxu0 0.0
        %832 = vmatprep.subr.mxu0 0.0
        %833 = vmatpush2.msra.mxu0 0.0
        %834 = vmatprep.subr.mxu0 0.0
        %835 = vmatpush2.msra.mxu0 0.0
        %836 = vmatprep.subr.mxu0 0.0
        %837 = vmatpush2.msra.mxu0 0.0
        %838 = vmatprep.subr.mxu0 0.0
        %839 = vmatpush2.msra.mxu0 0.0
        %840 = vmatprep.subr.mxu0 0.0
        %841 = vmatpush2.msra.mxu0 0.0
        %842 = vmatprep.subr.mxu0 0.0
        %843 = vmatpush2.msra.mxu0 0.0
        %844 = vmatprep.subr.mxu0 0.0
        %845 = vmatpush2.msra.mxu0 0.0
        %846 = vmatprep.subr.mxu0 0.0
        %847 = vmatpush2.msra.mxu0 0.0
        %848 = vmatprep.subr.mxu0 0.0
        %849 = vmatpush2.msra.mxu0 0.0
        %850 = vmatprep.subr.mxu0 0.0
        %851 = vmatpush2.msra.mxu0 0.0
        %852 = vmatprep.subr.mxu0 0.0
        %853 = vmatpush2.msra.mxu0 0.0
        %854 = vmatprep.mubr.f32.mxu0 0.0
        %855 = vmatmul.mubr.f32.gmra.mxu0 %v648
        %v856 = vpop.f32.mrf.mxu0
        %v857 = vadd.f32 %v787, %v856
        %v858 = vpop.f32.mrf.mxu0
        %859 = vdwg.mxu0
        %v860 = vsub.f32 0.0, %v857
        %v861 = vmul.f32 %v860, 1.442695
        %v862 = vpow.pop %v861
        %v863 = vadd.f32 %v862, 1.0
        %v864 = vrcp.pop %v863
        %v865 = vmul.f32 1.0, %v864
        %866 = vst [vmem:[%s194] sm:$0x1] %v865
      $region40: #{channel_attention.1} parent=31 // pred_fallthru
        _
      %p867 = scmp.lt.s32.totalorder %s18, 1
      %s868 = scalar_select %p867, %s18, 1
      %s869 = scalar_lea.vmem %s3, %s868
      // Predicated region
      $region41: #{channel_attention.1} parent=31 // pred_check
        %p870 = pneg %p114
      $region42: #{channel_attention.1} parent=31 // pred_check_branch
        %872 = sbr.rel (%p870) target = $region44
      $region43: #{channel_attention.1} parent=31 // pred_region
        _
      $region44: #{channel_attention.1} parent=31 // pred_fallthru
        _
    $region32: #{channel_attention.1} parent=5 // pred_fallthru
      _
    %p873 = scmp.le.s32.totalorder 2, %s9
    // Predicated region
    $region45: #{channel_attention.1} parent=5 // pred_check
      %p874 = pneg %p873
    $region46: #{channel_attention.1} parent=5 // pred_check_branch
      %876 = sbr.rel (%p874) target = $region48
    $region47: #{channel_attention.1} parent=5 // pred_region
      %s877 = ssub.s32 %s9, 2
      // Predicated region
      $region49: #{channel_attention.1} parent=47 // pred_check
        %p878 = pneg %p120
      $region50: #{channel_attention.1} parent=47 // pred_check_branch
        %880 = sbr.rel (%p878) target = $region52
      $region51: #{channel_attention.1} parent=47 // pred_region
        %p881 = scmp.lt.s32.totalorder %s20, 1
        %s882 = scalar_select %p881, %s20, 1
        %s883 = scalar_lea.vmem %s3, %s882
      $region52: #{channel_attention.1} parent=47 // pred_fallthru
        _
    $region48: #{channel_attention.1} parent=5 // pred_fallthru
      _
  $region6: #{channel_attention.1} parent=0 // loop_footer
    %s13 = sadd.s32 1, %s9
  $region7: #{channel_attention.1} parent=0 // loop_footer_branch
    %8 = sbr.rel target = $region3
  $region8: #{channel_attention.1} parent=0 // loop_exit
    _

</llo_original>
